<compile_context>
chip_gen: v6e
topology: v6e:2x2x1
jax: 0.10.0
libtpu: 0.0.40
codegen_flags: <defaults>
</compile_context>

<pallas_src>
import jax
import jax.numpy as jnp
from jax.experimental import pallas as pl
from jax.experimental.pallas import tpu as pltpu


def _attention_scores_kernel(x_ref, w1_ref, b1_ref, w2_ref, b2_ref,
                             s_ref, m_out, l_out, acc_out,
                             m_sc, l_sc, acc_sc):
    """Grid = (num_cores, tiles_per_core); axis 1 streams the instance axis N.

    x_ref  : (TN, L)   f32   current tile of instance features (== H)
    w1_ref : (L, D)    bf16  attention layer-1 weight (pre-transposed)
    b1_ref : (1, D)    f32
    w2_ref : (K, D)    bf16  attention layer-2 weight (torch layout)
    b2_ref : (1, 1)    f32   SMEM scalar
    s_ref  : (K, TN)   f32   streamed per-tile raw attention scores
    m_out  : (1, K, 1) f32   per-core running max        (written at last tile)
    l_out  : (1, K, 1) f32   per-core running sum of exp (written at last tile)
    acc_out: (1, K, L) f32   per-core exp-weighted sum of x (written at last tile)
    m_sc / l_sc / acc_sc     per-core VMEM scratch accumulators
    """
    i = pl.program_id(1)
    nt = pl.num_programs(1)

    @pl.when(i == 0)
    def _init():
        m_sc[...] = jnp.full_like(m_sc, -jnp.inf)
        l_sc[...] = jnp.zeros_like(l_sc)
        acc_sc[...] = jnp.zeros_like(acc_sc)

    # x streams from HBM once in f32; the MXU bf16 cast is a VPU op hidden
    # under the matmuls (no separate XLA cast pass over x).
    x_bf = x_ref[...].astype(jnp.bfloat16)                           # (TN, L)

    # Attention MLP: Linear -> tanh -> Linear (scores come out lane-dense).
    h = jnp.tanh(
        jnp.dot(x_bf, w1_ref[...], preferred_element_type=jnp.float32)
        + b1_ref[...])                                               # (TN, D) f32
    s = jax.lax.dot_general(                                         # w2 @ h^T
        w2_ref[...], h.astype(jnp.bfloat16),
        dimension_numbers=(((1,), (1,)), ((), ())),
        preferred_element_type=jnp.float32) + b2_ref[0, 0]           # (K, TN) f32

    # Stream this tile's raw scores out (pipelined, lane-dense block store).
    s_ref[...] = s

    # Online-softmax statistics + max-rescaled accumulation of exp(S) @ X.
    m_new = jnp.maximum(m_sc[...], jnp.max(s, axis=-1, keepdims=True))   # (K, 1)
    alpha = jnp.exp(m_sc[...] - m_new)                                   # (K, 1)
    p = jnp.exp(s - m_new)                                               # (K, TN)
    l_sc[...] = alpha * l_sc[...] + jnp.sum(p, axis=-1, keepdims=True)
    acc_sc[...] = alpha * acc_sc[...] + jnp.dot(
        p.astype(jnp.bfloat16), x_bf, preferred_element_type=jnp.float32)  # (K, L)
    m_sc[...] = m_new

    @pl.when(i == nt - 1)
    def _writeback():
        m_out[0] = m_sc[...]
        l_out[0] = l_sc[...]
        acc_out[0] = acc_sc[...]


def attention_output_head(x, params, *, tn=512, num_cores=2):
    """MIL attention head.  x: (N, L) float32.  Returns (Y_prob, Y_hat, A)."""
    N, L = x.shape
    w1, b1, w2, b2, wc, bc = params
    D = w1.shape[0]                 # torch Linear(L, D).weight is (D, L)
    K = w2.shape[0]                 # torch Linear(D, K).weight is (K, D)
    # The torch classifier Linear(L*K, 1) applied to M of shape (K, L) is only
    # consistent for K == 1 (as in AttentionDeepMIL); make that explicit.
    assert K == 1, "Attention_OutputHead classifier requires K == 1"
    assert wc.shape == (1, L * K)

    # Tile size over N (instance axis).  128/256-aligned tiles fill the MXU and
    # keep DMA efficiency high; VMEM use is independent of N.
    tn = min(tn, N)
    assert N % tn == 0, "N must be divisible by tn (no ragged-tail handling)"
    assert tn % 128 == 0 or tn == N, "tn must be a multiple of 128 (or == N)"
    nt = N // tn
    # Leading 'parallel' axis: shards the N reduction across both TensorCores
    # on v7x; serial (and harmless) on single-core v5e / v6e.
    nc = num_cores if (num_cores >= 1 and nt % num_cores == 0) else 1
    ntpc = nt // nc

    # glue: only tiny weight casts / reshapes; x itself streams untouched.
    w1_t = w1.T.astype(jnp.bfloat16)                 # (L, D) bf16 MXU operand
    b1_r = b1.reshape(1, D).astype(jnp.float32)
    w2_b = w2.astype(jnp.bfloat16)                   # (K, D) bf16 MXU operand
    b2_r = b2.reshape(1, 1).astype(jnp.float32)      # SMEM scalar

    s_raw, m_c, l_c, acc_c = pl.pallas_call(
        _attention_scores_kernel,
        grid=(nc, ntpc),
        out_shape=(
            jax.ShapeDtypeStruct((K, N), jnp.float32),       # raw scores S
            jax.ShapeDtypeStruct((nc, K, 1), jnp.float32),   # per-core max
            jax.ShapeDtypeStruct((nc, K, 1), jnp.float32),   # per-core sum of exp
            jax.ShapeDtypeStruct((nc, K, L), jnp.float32),   # per-core exp(S)@X
        ),
        in_specs=[
            pl.BlockSpec((tn, L), lambda c, i: (c * ntpc + i, 0)),   # x tiles over N
            pl.BlockSpec((L, D), lambda c, i: (0, 0)),               # w1 (resident)
            pl.BlockSpec((1, D), lambda c, i: (0, 0)),               # b1 (resident)
            pl.BlockSpec((K, D), lambda c, i: (0, 0)),               # w2 (resident)
            pl.BlockSpec(memory_space=pltpu.MemorySpace.SMEM),       # b2 scalar
        ],
        out_specs=(
            pl.BlockSpec((K, tn), lambda c, i: (0, c * ntpc + i)),   # streamed scores
            pl.BlockSpec((1, K, 1), lambda c, i: (c, 0, 0)),         # per-core m
            pl.BlockSpec((1, K, 1), lambda c, i: (c, 0, 0)),         # per-core l
            pl.BlockSpec((1, K, L), lambda c, i: (c, 0, 0)),         # per-core acc
        ),
        scratch_shapes=[
            pltpu.VMEM((K, 1), jnp.float32),                  # running max
            pltpu.VMEM((K, 1), jnp.float32),                  # running sum of exp
            pltpu.VMEM((K, L), jnp.float32),                  # running exp(S) @ X
        ],
        compiler_params=pltpu.CompilerParams(
            dimension_semantics=("parallel", "arbitrary"),
            vmem_limit_bytes=32 * 1024 * 1024),               # explicit v7x-safe budget
    )(x, w1_t, b1_r, w2_b, b2_r)

    # Tiny nc-way merge of the per-core online-softmax partials (fused XLA).
    m = jnp.max(m_c, axis=0)                                 # (K, 1) global max
    scale = jnp.exp(m_c - m)                                 # (nc, K, 1)
    l = jnp.sum(l_c * scale, axis=0)                         # (K, 1) global sum-exp
    acc = jnp.sum(acc_c * scale, axis=0)                     # (K, L)

    # A = softmax(S) (exact reciprocal); M = A @ H; classifier + sigmoid.
    a = jnp.exp(s_raw - m) / l                               # (K, N)
    m_kl = acc / l                                           # (K, L)
    logit = m_kl @ wc.astype(jnp.float32).T + bc.astype(jnp.float32)   # (K, 1)
    y_prob = jax.nn.sigmoid(logit)
    y_hat = (y_prob >= 0.5).astype(jnp.float32)
    return y_prob, y_hat, a


def _reference(x, params):
    """Pure-JAX f32 reference mirroring the torch forward (H := x)."""
    w1, b1, w2, b2, wc, bc = params
    a = jnp.tanh(x @ w1.T + b1) @ w2.T + b2          # (N, K)
    a = jax.nn.softmax(a.T, axis=1)                  # (K, N)
    m = a @ x                                        # (K, L)
    y_prob = jax.nn.sigmoid(m @ wc.T + bc)           # (K, 1)   (K == 1)
    y_hat = (y_prob >= 0.5).astype(jnp.float32)
    return y_prob, y_hat, a


def _init_params(key, L, D, K):
    """Deterministic torch-Linear-style init (uniform(-1/sqrt(fan_in), ...))."""
    ks = jax.random.split(key, 6)
    def lin(kw, kb, fan_in, fan_out):
        bound = 1.0 / jnp.sqrt(fan_in)
        w = jax.random.uniform(kw, (fan_out, fan_in), jnp.float32, -bound, bound)
        b = jax.random.uniform(kb, (fan_out,), jnp.float32, -bound, bound)
        return w, b
    w1, b1 = lin(ks[0], ks[1], L, D)          # Linear(L, D)
    w2, b2 = lin(ks[2], ks[3], D, K)          # Linear(D, K)
    wc, bc = lin(ks[4], ks[5], L * K, 1)      # Linear(L*K, 1)
    return w1, b1, w2, b2, wc, bc


if __name__ == "__main__":
    # Small shapes consistent with the module: N instances in the bag, L features,
    # D attention hidden units, K = 1 attention head (required by the classifier).
    N, L, D, K = 512, 32, 16, 1

    key = jax.random.PRNGKey(0)
    kx, kp = jax.random.split(key)
    x = jax.random.normal(kx, (N, L), jnp.float32)
    params = _init_params(kp, L, D, K)

    fn = jax.jit(attention_output_head, static_argnames=("tn", "num_cores"))

    # Multi-tile, 2-way core-split path (tn=128 -> 4 tiles, 2 per core axis entry).
    y_prob, y_hat, a = fn(x, params, tn=128, num_cores=2)
    jax.block_until_ready((y_prob, y_hat, a))

    # Single-tile / single-core path (defaults: tn=512 == N).
    y_prob1, y_hat1, a1 = fn(x, params)
    jax.block_until_ready((y_prob1, y_hat1, a1))

    y_prob_r, y_hat_r, a_r = _reference(x, params)

    for yp, yh, aa in ((y_prob, y_hat, a), (y_prob1, y_hat1, a1)):
        assert yp.shape == (K, 1) and yh.shape == (K, 1) and aa.shape == (K, N)
        # bf16 MXU operands (f32 accumulate) -> compare at a matching tolerance.
        assert jnp.allclose(aa, a_r, rtol=2e-2, atol=2e-2)
        assert jnp.allclose(jnp.sum(aa, axis=1), 1.0, atol=1e-4)
        assert jnp.allclose(yp, y_prob_r, rtol=2e-2, atol=2e-2)
        # Y_hat is the 0.5-threshold of the kernel's own Y_prob.
        assert jnp.all(yh == (yp >= 0.5).astype(jnp.float32))

    print("KERNEL_OK")
</pallas_src>

<mosaic_0001>
module attributes {stable_mosaic.version = 11 : i64} {
  func.func @_attention_scores_kernel(%arg0: i32, %arg1: i32, %arg2: memref<128x32xf32, #tpu.memory_space<vmem>>, %arg3: memref<32x16xbf16, #tpu.memory_space<vmem>>, %arg4: memref<1x16xf32, #tpu.memory_space<vmem>>, %arg5: memref<1x16xbf16, #tpu.memory_space<vmem>>, %arg6: memref<1x1xf32, #tpu.memory_space<smem>>, %arg7: memref<1x128xf32, #tpu.memory_space<vmem>>, %arg8: memref<1x1x1xf32, #tpu.memory_space<vmem>>, %arg9: memref<1x1x1xf32, #tpu.memory_space<vmem>>, %arg10: memref<1x1x32xf32, #tpu.memory_space<vmem>>, %arg11: memref<1x1xf32, #tpu.memory_space<vmem>>, %arg12: memref<1x1xf32, #tpu.memory_space<vmem>>, %arg13: memref<1x32xf32, #tpu.memory_space<vmem>>) attributes {dimension_semantics = [#tpu.dimension_semantics<parallel>, #tpu.dimension_semantics<arbitrary>], iteration_bounds = array<i64: 2, 2>, scalar_prefetch = 0 : i64, scratch_operands = 3 : i64, tpu.core_type = #tpu.core_type<tc>, window_params = [{transform_indices = @transform_0, window_bounds = array<i64: 128, 32>}, {pipeline_mode = #tpu.pipeline_mode<synchronous>, transform_indices = @transform_1, window_bounds = array<i64: 32, 16>}, {pipeline_mode = #tpu.pipeline_mode<synchronous>, transform_indices = @transform_2, window_bounds = array<i64: 1, 16>}, {pipeline_mode = #tpu.pipeline_mode<synchronous>, transform_indices = @transform_3, window_bounds = array<i64: 1, 16>}, {transform_indices = @transform_4, window_bounds = array<i64: 1, 1>}, {transform_indices = @transform_5, window_bounds = array<i64: 1, 128>}, {transform_indices = @transform_6, window_bounds = array<i64: 1, 1, 1>}, {transform_indices = @transform_7, window_bounds = array<i64: 1, 1, 1>}, {transform_indices = @transform_8, window_bounds = array<i64: 1, 1, 32>}]} {
    %c0_i32 = arith.constant 0 : i32
    %0 = arith.cmpi eq, %arg1, %c0_i32 : i32
    %1 = arith.extui %0 : i1 to i32
    %c0_i32_0 = arith.constant 0 : i32
    %2 = arith.cmpi ne, %1, %c0_i32_0 : i32
    scf.if %2 {
      %cst_31 = arith.constant 0xFF800000 : f32
      %45 = vector.broadcast %cst_31 : f32 to vector<1x1xf32>
      %c0_32 = arith.constant 0 : index
      %c0_33 = arith.constant 0 : index
      %46 = vector.load %arg11[%c0_32, %c0_33] : memref<1x1xf32, #tpu.memory_space<vmem>>, vector<1x1xf32>
      tpu.vector_store %arg11[%c0_32, %c0_33], %45 {strides = array<i32>} : memref<1x1xf32, #tpu.memory_space<vmem>>, vector<1x1xf32>,
      %cst_34 = arith.constant 0.000000e+00 : f32
      %47 = vector.broadcast %cst_34 : f32 to vector<1x1xf32>
      %c0_35 = arith.constant 0 : index
      %c0_36 = arith.constant 0 : index
      %48 = vector.load %arg12[%c0_35, %c0_36] : memref<1x1xf32, #tpu.memory_space<vmem>>, vector<1x1xf32>
      tpu.vector_store %arg12[%c0_35, %c0_36], %47 {strides = array<i32>} : memref<1x1xf32, #tpu.memory_space<vmem>>, vector<1x1xf32>,
      %cst_37 = arith.constant 0.000000e+00 : f32
      %49 = vector.broadcast %cst_37 : f32 to vector<1x32xf32>
      %c0_38 = arith.constant 0 : index
      %c0_39 = arith.constant 0 : index
      %50 = vector.load %arg13[%c0_38, %c0_39] : memref<1x32xf32, #tpu.memory_space<vmem>>, vector<1x32xf32>
      tpu.vector_store %arg13[%c0_38, %c0_39], %49 {strides = array<i32>} : memref<1x32xf32, #tpu.memory_space<vmem>>, vector<1x32xf32>,
    } else {
    }
    %c0 = arith.constant 0 : index
    %c0_1 = arith.constant 0 : index
    %3 = vector.load %arg2[%c0, %c0_1] : memref<128x32xf32, #tpu.memory_space<vmem>>, vector<128x32xf32>
    %4 = arith.truncf %3 : vector<128x32xf32> to vector<128x32xbf16>
    %c0_2 = arith.constant 0 : index
    %c0_3 = arith.constant 0 : index
    %5 = vector.load %arg3[%c0_2, %c0_3] : memref<32x16xbf16, #tpu.memory_space<vmem>>, vector<32x16xbf16>
    %cst = arith.constant dense<0.000000e+00> : vector<128x16xf32>
    %6 = tpu.matmul %4, %5, %cst {dimension_numbers = #tpu.dot_dimension_numbers<[1], [0], [0], [1], [0, 0, 1, 1], [], []>} : vector<128x32xbf16>, vector<32x16xbf16>, vector<128x16xf32> -> vector<128x16xf32>
    %c0_4 = arith.constant 0 : index
    %c0_5 = arith.constant 0 : index
    %7 = vector.load %arg4[%c0_4, %c0_5] : memref<1x16xf32, #tpu.memory_space<vmem>>, vector<1x16xf32>
    %8 = vector.broadcast %7 : vector<1x16xf32> to vector<128x16xf32>
    %9 = arith.addf %6, %8 : vector<128x16xf32>
    %10 = math.tanh %9 : vector<128x16xf32>
    %c0_6 = arith.constant 0 : index
    %c0_7 = arith.constant 0 : index
    %11 = vector.load %arg5[%c0_6, %c0_7] : memref<1x16xbf16, #tpu.memory_space<vmem>>, vector<1x16xbf16>
    %12 = arith.truncf %10 : vector<128x16xf32> to vector<128x16xbf16>
    %cst_8 = arith.constant dense<0.000000e+00> : vector<1x128xf32>
    %13 = tpu.matmul %11, %12, %cst_8 {dimension_numbers = #tpu.dot_dimension_numbers<[1], [1], [0], [0], [0, 0, 1, 0], [], []>} : vector<1x16xbf16>, vector<128x16xbf16>, vector<1x128xf32> -> vector<1x128xf32>
    %c0_9 = arith.constant 0 : index
    %c0_10 = arith.constant 0 : index
    %14 = memref.load %arg6[%c0_9, %c0_10] : memref<1x1xf32, #tpu.memory_space<smem>>
    %15 = vector.broadcast %14 : f32 to vector<1x128xf32>
    %16 = arith.addf %13, %15 : vector<1x128xf32>
    %c0_11 = arith.constant 0 : index
    %c0_12 = arith.constant 0 : index
    %17 = vector.load %arg7[%c0_11, %c0_12] : memref<1x128xf32, #tpu.memory_space<vmem>>, vector<1x128xf32>
    tpu.vector_store %arg7[%c0_11, %c0_12], %16 {strides = array<i32>} : memref<1x128xf32, #tpu.memory_space<vmem>>, vector<1x128xf32>,
    %c0_13 = arith.constant 0 : index
    %c0_14 = arith.constant 0 : index
    %18 = vector.load %arg11[%c0_13, %c0_14] : memref<1x1xf32, #tpu.memory_space<vmem>>, vector<1x1xf32>
    %cst_15 = arith.constant dense<0xFF800000> : vector<1xf32>
    %19 = vector.multi_reduction <maximumf>, %16, %cst_15 [1] : vector<1x128xf32> to vector<1xf32>
    %20 = vector.shape_cast %19 : vector<1xf32> to vector<1x1xf32>
    %21 = arith.maximumf %18, %20 : vector<1x1xf32>
    %c0_16 = arith.constant 0 : index
    %c0_17 = arith.constant 0 : index
    %22 = vector.load %arg11[%c0_16, %c0_17] : memref<1x1xf32, #tpu.memory_space<vmem>>, vector<1x1xf32>
    %23 = arith.subf %22, %21 : vector<1x1xf32>
    %24 = math.exp %23 : vector<1x1xf32>
    %25 = vector.broadcast %21 : vector<1x1xf32> to vector<1x128xf32>
    %26 = arith.subf %16, %25 : vector<1x128xf32>
    %27 = math.exp %26 : vector<1x128xf32>
    %c0_18 = arith.constant 0 : index
    %c0_19 = arith.constant 0 : index
    %28 = vector.load %arg12[%c0_18, %c0_19] : memref<1x1xf32, #tpu.memory_space<vmem>>, vector<1x1xf32>
    %29 = arith.mulf %24, %28 : vector<1x1xf32>
    %cst_20 = arith.constant dense<0.000000e+00> : vector<1xf32>
    %30 = vector.multi_reduction <add>, %27, %cst_20 [1] : vector<1x128xf32> to vector<1xf32>
    %31 = vector.shape_cast %30 : vector<1xf32> to vector<1x1xf32>
    %32 = arith.addf %29, %31 : vector<1x1xf32>
    %c0_21 = arith.constant 0 : index
    %c0_22 = arith.constant 0 : index
    %33 = vector.load %arg12[%c0_21, %c0_22] : memref<1x1xf32, #tpu.memory_space<vmem>>, vector<1x1xf32>
    tpu.vector_store %arg12[%c0_21, %c0_22], %32 {strides = array<i32>} : memref<1x1xf32, #tpu.memory_space<vmem>>, vector<1x1xf32>,
    %c0_23 = arith.constant 0 : index
    %c0_24 = arith.constant 0 : index
    %34 = vector.load %arg13[%c0_23, %c0_24] : memref<1x32xf32, #tpu.memory_space<vmem>>, vector<1x32xf32>
    %35 = vector.broadcast %24 : vector<1x1xf32> to vector<1x32xf32>
    %36 = arith.mulf %35, %34 : vector<1x32xf32>
    %37 = arith.truncf %27 : vector<1x128xf32> to vector<1x128xbf16>
    %cst_25 = arith.constant dense<0.000000e+00> : vector<1x32xf32>
    %38 = tpu.matmul %37, %4, %cst_25 {dimension_numbers = #tpu.dot_dimension_numbers<[1], [0], [0], [1], [0, 0, 1, 1], [], []>} : vector<1x128xbf16>, vector<128x32xbf16>, vector<1x32xf32> -> vector<1x32xf32>
    %39 = arith.addf %36, %38 : vector<1x32xf32>
    %c0_26 = arith.constant 0 : index
    %c0_27 = arith.constant 0 : index
    %40 = vector.load %arg13[%c0_26, %c0_27] : memref<1x32xf32, #tpu.memory_space<vmem>>, vector<1x32xf32>
    tpu.vector_store %arg13[%c0_26, %c0_27], %39 {strides = array<i32>} : memref<1x32xf32, #tpu.memory_space<vmem>>, vector<1x32xf32>,
    %c0_28 = arith.constant 0 : index
    %c0_29 = arith.constant 0 : index
    %41 = vector.load %arg11[%c0_28, %c0_29] : memref<1x1xf32, #tpu.memory_space<vmem>>, vector<1x1xf32>
    tpu.vector_store %arg11[%c0_28, %c0_29], %21 {strides = array<i32>} : memref<1x1xf32, #tpu.memory_space<vmem>>, vector<1x1xf32>,
    %c1_i32 = arith.constant 1 : i32
    %42 = arith.cmpi eq, %arg1, %c1_i32 : i32
    %43 = arith.extui %42 : i1 to i32
    %c0_i32_30 = arith.constant 0 : i32
    %44 = arith.cmpi ne, %43, %c0_i32_30 : i32
    scf.if %44 {
      %c0_31 = arith.constant 0 : index
      %c0_32 = arith.constant 0 : index
      %45 = vector.load %arg11[%c0_31, %c0_32] : memref<1x1xf32, #tpu.memory_space<vmem>>, vector<1x1xf32>
      %c0_33 = arith.constant 0 : index
      %c0_34 = arith.constant 0 : index
      %c0_35 = arith.constant 0 : index
      %46 = vector.load %arg8[%c0_33, %c0_34, %c0_35] : memref<1x1x1xf32, #tpu.memory_space<vmem>>, vector<1x1x1xf32>
      %47 = vector.shape_cast %46 : vector<1x1x1xf32> to vector<1x1xf32>
      %48 = vector.shape_cast %45 : vector<1x1xf32> to vector<1x1x1xf32>
      tpu.vector_store %arg8[%c0_33, %c0_34, %c0_35], %48 {strides = array<i32>} : memref<1x1x1xf32, #tpu.memory_space<vmem>>, vector<1x1x1xf32>,
      %c0_36 = arith.constant 0 : index
      %c0_37 = arith.constant 0 : index
      %49 = vector.load %arg12[%c0_36, %c0_37] : memref<1x1xf32, #tpu.memory_space<vmem>>, vector<1x1xf32>
      %c0_38 = arith.constant 0 : index
      %c0_39 = arith.constant 0 : index
      %c0_40 = arith.constant 0 : index
      %50 = vector.load %arg9[%c0_38, %c0_39, %c0_40] : memref<1x1x1xf32, #tpu.memory_space<vmem>>, vector<1x1x1xf32>
      %51 = vector.shape_cast %50 : vector<1x1x1xf32> to vector<1x1xf32>
      %52 = vector.shape_cast %49 : vector<1x1xf32> to vector<1x1x1xf32>
      tpu.vector_store %arg9[%c0_38, %c0_39, %c0_40], %52 {strides = array<i32>} : memref<1x1x1xf32, #tpu.memory_space<vmem>>, vector<1x1x1xf32>,
      %c0_41 = arith.constant 0 : index
      %c0_42 = arith.constant 0 : index
      %53 = vector.load %arg13[%c0_41, %c0_42] : memref<1x32xf32, #tpu.memory_space<vmem>>, vector<1x32xf32>
      %c0_43 = arith.constant 0 : index
      %c0_44 = arith.constant 0 : index
      %c0_45 = arith.constant 0 : index
      %54 = vector.load %arg10[%c0_43, %c0_44, %c0_45] : memref<1x1x32xf32, #tpu.memory_space<vmem>>, vector<1x1x32xf32>
      %55 = vector.shape_cast %54 : vector<1x1x32xf32> to vector<1x32xf32>
      %56 = vector.shape_cast %53 : vector<1x32xf32> to vector<1x1x32xf32>
      tpu.vector_store %arg10[%c0_43, %c0_44, %c0_45], %56 {strides = array<i32>} : memref<1x1x32xf32, #tpu.memory_space<vmem>>, vector<1x1x32xf32>,
    } else {
    }
    return
  }
  func.func @transform_0(%arg0: i32, %arg1: i32) -> (i32, i32) {
    %c2_i32 = arith.constant 2 : i32
    %0 = arith.muli %arg0, %c2_i32 : i32
    %1 = arith.addi %0, %arg1 : i32
    %c0_i32 = arith.constant 0 : i32
    %c0_i32_0 = arith.constant 0 : i32
    return %1, %c0_i32 : i32, i32
  }
  func.func @transform_1(%arg0: i32, %arg1: i32) -> (i32, i32) {
    %c0_i32 = arith.constant 0 : i32
    %c0_i32_0 = arith.constant 0 : i32
    %c0_i32_1 = arith.constant 0 : i32
    return %c0_i32, %c0_i32_0 : i32, i32
  }
  func.func @transform_2(%arg0: i32, %arg1: i32) -> (i32, i32) {
    %c0_i32 = arith.constant 0 : i32
    %c0_i32_0 = arith.constant 0 : i32
    %c0_i32_1 = arith.constant 0 : i32
    return %c0_i32, %c0_i32_0 : i32, i32
  }
  func.func @transform_3(%arg0: i32, %arg1: i32) -> (i32, i32) {
    %c0_i32 = arith.constant 0 : i32
    %c0_i32_0 = arith.constant 0 : i32
    %c0_i32_1 = arith.constant 0 : i32
    return %c0_i32, %c0_i32_0 : i32, i32
  }
  func.func @transform_4(%arg0: i32, %arg1: i32) -> (i32, i32) {
    %c0_i32 = arith.constant 0 : i32
    %c0_i32_0 = arith.constant 0 : i32
    %c0_i32_1 = arith.constant 0 : i32
    return %c0_i32, %c0_i32_0 : i32, i32
  }
  func.func @transform_5(%arg0: i32, %arg1: i32) -> (i32, i32) {
    %c2_i32 = arith.constant 2 : i32
    %0 = arith.muli %arg0, %c2_i32 : i32
    %1 = arith.addi %0, %arg1 : i32
    %c0_i32 = arith.constant 0 : i32
    %c0_i32_0 = arith.constant 0 : i32
    return %c0_i32, %1 : i32, i32
  }
  func.func @transform_6(%arg0: i32, %arg1: i32) -> (i32, i32, i32) {
    %c0_i32 = arith.constant 0 : i32
    %c0_i32_0 = arith.constant 0 : i32
    %c0_i32_1 = arith.constant 0 : i32
    return %arg0, %c0_i32, %c0_i32_0 : i32, i32, i32
  }
  func.func @transform_7(%arg0: i32, %arg1: i32) -> (i32, i32, i32) {
    %c0_i32 = arith.constant 0 : i32
    %c0_i32_0 = arith.constant 0 : i32
    %c0_i32_1 = arith.constant 0 : i32
    return %arg0, %c0_i32, %c0_i32_0 : i32, i32, i32
  }
  func.func @transform_8(%arg0: i32, %arg1: i32) -> (i32, i32, i32) {
    %c0_i32 = arith.constant 0 : i32
    %c0_i32_0 = arith.constant 0 : i32
    %c0_i32_1 = arith.constant 0 : i32
    return %arg0, %c0_i32, %c0_i32_0 : i32, i32, i32
  }
}

</mosaic_0001>

<llo_original>
// kernel: attention_output_head.1
$region0: #{attention_output_head.1}
  #allocation0 [shape = 'u32[]', space=smem, size = 0x4, offset = 0x4, fixed_abs, tag = 'smem constant byte address 0x4 - core index']
  #allocation1 [shape = 'u32[144,128]{1,0:T(1,128)}', space=vmem, size = 0x12000, scoped, tag = 'internal scratch']
  #allocation2 [shape = 'f32[1,1]{1,0:T(1,128)}', space=vmem, size = 0x200, scoped, tag = 'scratch operand']
  #allocation3 [shape = 'f32[1,1]{1,0:T(1,128)}', space=vmem, size = 0x200, scoped, tag = 'scratch operand']
  #allocation4 [shape = 'f32[1,32]{1,0:T(1,128)}', space=vmem, size = 0x200, scoped, tag = 'scratch operand']
  #allocation5 [shape = 'f32[1,1]{1,0:T(1,128)S(6)}', space=smem, size = 0x200, scoped, tag = 'scoped memory for attention_output_head.1']
  %s0 = inlined_call_operand.vmem [shape: f32[512,32], index: 0, kind: input, shape index: {}]
  %s1 = inlined_call_operand.vmem [shape: bf16[32,16], index: 1, kind: input, shape index: {}]
  %s2 = inlined_call_operand.vmem [shape: f32[1,16], index: 2, kind: input, shape index: {}]
  %s3 = inlined_call_operand.vmem [shape: bf16[1,16], index: 3, kind: input, shape index: {}]
  %s4 = inlined_call_operand.<no memory space> [shape: f32[1,1], index: 4, kind: input, shape index: {}]
  %s5 = inlined_call_operand.vmem [shape: f32[1,512], index: 5, kind: output, shape index: {0}]
  %s6 = inlined_call_operand.vmem [shape: f32[2,1,1], index: 6, kind: output, shape index: {1}]
  %s7 = inlined_call_operand.vmem [shape: f32[2,1,1], index: 7, kind: output, shape index: {2}]
  %s8 = inlined_call_operand.vmem [shape: f32[2,1,32], index: 8, kind: output, shape index: {3}]
  %9 = xla_tuple %s5, %s6, %s7, %s8
  %s10 = sld [smem:[#allocation0]]
  $region85: #{attention_output_head.1} parent=0
    _
  %s12 = ssub.s32 1, %s10
  %s13 = scalar_select 0, %s12, %s10
  %14 = sst [smem:[#allocation5]] %s4
  loop: start=0, step=1, limit=6
  $region2: #{attention_output_head.1} parent=0 // loop_pre_header
    _
  $region3: #{attention_output_head.1} parent=0 // loop_header
    %s16 = sphi 0, %s20
    %p17 = scmp.ge.s32.totalorder %s16, 6
    %s23 = sphi 0, %s35
    %s24 = sphi 0, %s31
    %s25 = sphi 0, %s23
    %s26 = sphi 0, %s24
    %s27 = sphi 0, %s25
    %s28 = sphi 0, %s26
    %s42 = sphi 0, %s44
    %s45 = sphi 0, %s42
    %s46 = sphi 0, %s45
    %s62 = sphi 0, %s46
    %s66 = sphi 0, %s66
    %s68 = sphi 0, %s66
    %s69 = sphi 0, %s68
    %s83 = sphi 0, %s69
    %s87 = sphi 0, %s87
    %s89 = sphi 0, %s87
    %s90 = sphi 0, %s89
    %s104 = sphi 0, %s90
    %s108 = sphi 0, %s108
    %s110 = sphi 0, %s108
    %s111 = sphi 0, %s110
    %s125 = sphi 0, %s111
    %s129 = sphi 0, %s129
    %s131 = sphi 0, %s129
    %s132 = sphi 0, %s131
    %s146 = sphi 0, %s132
    %s156 = sphi 0, %s158
    %s159 = sphi 0, %s156
    %s160 = sphi 0, %s159
    %s176 = sphi 0, %s160
    %s182 = sphi 0, %s184
    %s185 = sphi 0, %s182
    %s186 = sphi 0, %s185
    %s202 = sphi 0, %s186
    %s208 = sphi 0, %s210
    %s211 = sphi 0, %s208
    %s212 = sphi 0, %s211
    %s228 = sphi 0, %s212
    %s234 = sphi 0, %s236
    %s237 = sphi 0, %s234
    %s238 = sphi 0, %s237
    %s254 = sphi 0, %s238
  $region4: #{attention_output_head.1} parent=0 // loop_header_branch
    %19 = sbr.rel (%p17) target = $region8
  $region5: #{attention_output_head.1} parent=0 // loop_body
    %s21 = ssub.s32 %s16, 1
    %s22 = ssub.s32 %s16, 2
    %s29 = sadd.s32 1, %s24
    %p30 = scmp.ge.s32.totalorder %s29, 2
    %s31 = scalar_select %p30, 0, %s29
    %s32 = sadd.s32 1, %s23
    %s33 = scalar_select %p30, %s32, %s23
    %p34 = scmp.ge.s32.totalorder %s33, 2
    %s35 = scalar_select %p34, 0, %s33
    %s36 = smul.u32 %s23, 2
    %s37 = sadd.s32 %s36, %s24
    %s38 = smul.u32 %s35, 2
    %s39 = sadd.s32 %s38, %s31
    %s40 = ssub.s32 %s37, %s39
    %p41 = scmp.eq.s32.totalorder %s40, 0
    %s43 = sadd.s32 %s42, 1
    %s44 = scalar_select %p41, %s42, %s43
    %p47 = pneg %p41
    %p48 = scmp.eq.s32.totalorder %s16, 3
    %p49 = por %p47, %p48
    %p50 = scmp.ne.s32.totalorder %s42, %s45
    %p51 = scmp.eq.s32.totalorder %s16, 0
    %p52 = por %p50, %p51
    %p53 = scmp.ne.s32.totalorder %s42, %s45
    %p54 = scmp.eq.s32.totalorder %s21, 3
    %p55 = por %p53, %p54
    %p56 = scmp.ne.s32.totalorder %s45, %s46
    %p57 = scmp.eq.s32.totalorder %s21, 0
    %p58 = por %p56, %p57
    %p59 = scmp.ne.s32.totalorder %s45, %s46
    %p60 = scmp.eq.s32.totalorder %s22, 3
    %p61 = por %p59, %p60
    %p63 = scmp.ne.s32.totalorder %s46, %s62
    %p64 = scmp.eq.s32.totalorder %s22, 0
    %p65 = por %p63, %p64
    %s67 = sadd.s32 %s66, 1
    %p70 = scmp.eq.s32.totalorder %s16, 3
    %p71 = scmp.ne.s32.totalorder %s66, %s68
    %p72 = scmp.eq.s32.totalorder %s16, 0
    %p73 = por %p71, %p72
    %p74 = scmp.ne.s32.totalorder %s66, %s68
    %p75 = scmp.eq.s32.totalorder %s21, 3
    %p76 = por %p74, %p75
    %p77 = scmp.ne.s32.totalorder %s68, %s69
    %p78 = scmp.eq.s32.totalorder %s21, 0
    %p79 = por %p77, %p78
    %p80 = scmp.ne.s32.totalorder %s68, %s69
    %p81 = scmp.eq.s32.totalorder %s22, 3
    %p82 = por %p80, %p81
    %p84 = scmp.ne.s32.totalorder %s69, %s83
    %p85 = scmp.eq.s32.totalorder %s22, 0
    %p86 = por %p84, %p85
    %s88 = sadd.s32 %s87, 1
    %p91 = scmp.eq.s32.totalorder %s16, 3
    %p92 = scmp.ne.s32.totalorder %s87, %s89
    %p93 = scmp.eq.s32.totalorder %s16, 0
    %p94 = por %p92, %p93
    %p95 = scmp.ne.s32.totalorder %s87, %s89
    %p96 = scmp.eq.s32.totalorder %s21, 3
    %p97 = por %p95, %p96
    %p98 = scmp.ne.s32.totalorder %s89, %s90
    %p99 = scmp.eq.s32.totalorder %s21, 0
    %p100 = por %p98, %p99
    %p101 = scmp.ne.s32.totalorder %s89, %s90
    %p102 = scmp.eq.s32.totalorder %s22, 3
    %p103 = por %p101, %p102
    %p105 = scmp.ne.s32.totalorder %s90, %s104
    %p106 = scmp.eq.s32.totalorder %s22, 0
    %p107 = por %p105, %p106
    %s109 = sadd.s32 %s108, 1
    %p112 = scmp.eq.s32.totalorder %s16, 3
    %p113 = scmp.ne.s32.totalorder %s108, %s110
    %p114 = scmp.eq.s32.totalorder %s16, 0
    %p115 = por %p113, %p114
    %p116 = scmp.ne.s32.totalorder %s108, %s110
    %p117 = scmp.eq.s32.totalorder %s21, 3
    %p118 = por %p116, %p117
    %p119 = scmp.ne.s32.totalorder %s110, %s111
    %p120 = scmp.eq.s32.totalorder %s21, 0
    %p121 = por %p119, %p120
    %p122 = scmp.ne.s32.totalorder %s110, %s111
    %p123 = scmp.eq.s32.totalorder %s22, 3
    %p124 = por %p122, %p123
    %p126 = scmp.ne.s32.totalorder %s111, %s125
    %p127 = scmp.eq.s32.totalorder %s22, 0
    %p128 = por %p126, %p127
    %s130 = sadd.s32 %s129, 1
    %p133 = scmp.eq.s32.totalorder %s16, 3
    %p134 = scmp.ne.s32.totalorder %s129, %s131
    %p135 = scmp.eq.s32.totalorder %s16, 0
    %p136 = por %p134, %p135
    %p137 = scmp.ne.s32.totalorder %s129, %s131
    %p138 = scmp.eq.s32.totalorder %s21, 3
    %p139 = por %p137, %p138
    %p140 = scmp.ne.s32.totalorder %s131, %s132
    %p141 = scmp.eq.s32.totalorder %s21, 0
    %p142 = por %p140, %p141
    %p143 = scmp.ne.s32.totalorder %s131, %s132
    %p144 = scmp.eq.s32.totalorder %s22, 3
    %p145 = por %p143, %p144
    %p147 = scmp.ne.s32.totalorder %s132, %s146
    %p148 = scmp.eq.s32.totalorder %s22, 0
    %p149 = por %p147, %p148
    %s150 = smul.u32 %s23, 2
    %s151 = sadd.s32 %s150, %s24
    %s152 = smul.u32 %s35, 2
    %s153 = sadd.s32 %s152, %s31
    %s154 = ssub.s32 %s151, %s153
    %p155 = scmp.eq.s32.totalorder %s154, 0
    %s157 = sadd.s32 %s156, 1
    %s158 = scalar_select %p155, %s156, %s157
    %p161 = pneg %p155
    %p162 = scmp.eq.s32.totalorder %s16, 3
    %p163 = por %p161, %p162
    %p164 = scmp.ne.s32.totalorder %s156, %s159
    %p165 = scmp.eq.s32.totalorder %s16, 0
    %p166 = por %p164, %p165
    %p167 = scmp.ne.s32.totalorder %s156, %s159
    %p168 = scmp.eq.s32.totalorder %s21, 3
    %p169 = por %p167, %p168
    %p170 = scmp.ne.s32.totalorder %s159, %s160
    %p171 = scmp.eq.s32.totalorder %s21, 0
    %p172 = por %p170, %p171
    %p173 = scmp.ne.s32.totalorder %s159, %s160
    %p174 = scmp.eq.s32.totalorder %s22, 3
    %p175 = por %p173, %p174
    %p177 = scmp.ne.s32.totalorder %s160, %s176
    %p178 = scmp.eq.s32.totalorder %s22, 0
    %p179 = por %p177, %p178
    %s180 = ssub.s32 %s23, %s35
    %p181 = scmp.eq.s32.totalorder %s180, 0
    %s183 = sadd.s32 %s182, 1
    %s184 = scalar_select %p181, %s182, %s183
    %p187 = pneg %p181
    %p188 = scmp.eq.s32.totalorder %s16, 3
    %p189 = por %p187, %p188
    %p190 = scmp.ne.s32.totalorder %s182, %s185
    %p191 = scmp.eq.s32.totalorder %s16, 0
    %p192 = por %p190, %p191
    %p193 = scmp.ne.s32.totalorder %s182, %s185
    %p194 = scmp.eq.s32.totalorder %s21, 3
    %p195 = por %p193, %p194
    %p196 = scmp.ne.s32.totalorder %s185, %s186
    %p197 = scmp.eq.s32.totalorder %s21, 0
    %p198 = por %p196, %p197
    %p199 = scmp.ne.s32.totalorder %s185, %s186
    %p200 = scmp.eq.s32.totalorder %s22, 3
    %p201 = por %p199, %p200
    %p203 = scmp.ne.s32.totalorder %s186, %s202
    %p204 = scmp.eq.s32.totalorder %s22, 0
    %p205 = por %p203, %p204
    %s206 = ssub.s32 %s23, %s35
    %p207 = scmp.eq.s32.totalorder %s206, 0
    %s209 = sadd.s32 %s208, 1
    %s210 = scalar_select %p207, %s208, %s209
    %p213 = pneg %p207
    %p214 = scmp.eq.s32.totalorder %s16, 3
    %p215 = por %p213, %p214
    %p216 = scmp.ne.s32.totalorder %s208, %s211
    %p217 = scmp.eq.s32.totalorder %s16, 0
    %p218 = por %p216, %p217
    %p219 = scmp.ne.s32.totalorder %s208, %s211
    %p220 = scmp.eq.s32.totalorder %s21, 3
    %p221 = por %p219, %p220
    %p222 = scmp.ne.s32.totalorder %s211, %s212
    %p223 = scmp.eq.s32.totalorder %s21, 0
    %p224 = por %p222, %p223
    %p225 = scmp.ne.s32.totalorder %s211, %s212
    %p226 = scmp.eq.s32.totalorder %s22, 3
    %p227 = por %p225, %p226
    %p229 = scmp.ne.s32.totalorder %s212, %s228
    %p230 = scmp.eq.s32.totalorder %s22, 0
    %p231 = por %p229, %p230
    %s232 = ssub.s32 %s23, %s35
    %p233 = scmp.eq.s32.totalorder %s232, 0
    %s235 = sadd.s32 %s234, 1
    %s236 = scalar_select %p233, %s234, %s235
    %p239 = pneg %p233
    %p240 = scmp.eq.s32.totalorder %s16, 3
    %p241 = por %p239, %p240
    %p242 = scmp.ne.s32.totalorder %s234, %s237
    %p243 = scmp.eq.s32.totalorder %s16, 0
    %p244 = por %p242, %p243
    %p245 = scmp.ne.s32.totalorder %s234, %s237
    %p246 = scmp.eq.s32.totalorder %s21, 3
    %p247 = por %p245, %p246
    %p248 = scmp.ne.s32.totalorder %s237, %s238
    %p249 = scmp.eq.s32.totalorder %s21, 0
    %p250 = por %p248, %p249
    %p251 = scmp.ne.s32.totalorder %s237, %s238
    %p252 = scmp.eq.s32.totalorder %s22, 3
    %p253 = por %p251, %p252
    %p255 = scmp.ne.s32.totalorder %s238, %s254
    %p256 = scmp.eq.s32.totalorder %s22, 0
    %p257 = por %p255, %p256
    %p258 = scmp.le.s32.totalorder 1, %s16
    %p259 = scmp.lt.s32.totalorder %s16, 5
    %p260 = pnand %p258, %p259
    %p261 = pneg %p260
    // Predicated region
    $region9: #{attention_output_head.1} parent=5 // pred_check
      _
    $region10: #{attention_output_head.1} parent=5 // pred_check_branch
      %263 = sbr.rel (%p260) target = $region12
    $region11: #{attention_output_head.1} parent=5 // pred_region
      %s264 = ssub.s32 %s16, 1
      // Predicated region
      $region13: #{attention_output_head.1} parent=11 // pred_check
        %p265 = pneg %p79
      $region14: #{attention_output_head.1} parent=11 // pred_check_branch
        %267 = sbr.rel (%p265) target = $region16
      $region15: #{attention_output_head.1} parent=11 // pred_region
        _
      $region16: #{attention_output_head.1} parent=11 // pred_fallthru
        _
      // Predicated region
      $region17: #{attention_output_head.1} parent=11 // pred_check
        %p268 = pneg %p100
      $region18: #{attention_output_head.1} parent=11 // pred_check_branch
        %270 = sbr.rel (%p268) target = $region20
      $region19: #{attention_output_head.1} parent=11 // pred_region
        _
      $region20: #{attention_output_head.1} parent=11 // pred_fallthru
        _
      // Predicated region
      $region21: #{attention_output_head.1} parent=11 // pred_check
        %p271 = pneg %p121
      $region22: #{attention_output_head.1} parent=11 // pred_check_branch
        %273 = sbr.rel (%p271) target = $region24
      $region23: #{attention_output_head.1} parent=11 // pred_region
        _
      $region24: #{attention_output_head.1} parent=11 // pred_fallthru
        _
      // Predicated region
      $region25: #{attention_output_head.1} parent=11 // pred_check
        %p274 = pneg %p142
      $region26: #{attention_output_head.1} parent=11 // pred_check_branch
        %276 = sbr.rel (%p274) target = $region28
      $region27: #{attention_output_head.1} parent=11 // pred_region
        _
      $region28: #{attention_output_head.1} parent=11 // pred_fallthru
        _
    $region12: #{attention_output_head.1} parent=5 // pred_fallthru
      _
    %p277 = scmp.lt.s32.totalorder %s16, 4
    // Predicated region
    $region29: #{attention_output_head.1} parent=5 // pred_check
      %p278 = pneg %p277
    $region30: #{attention_output_head.1} parent=5 // pred_check_branch
      %280 = sbr.rel (%p278) target = $region32
    $region31: #{attention_output_head.1} parent=5 // pred_region
      // Predicated region
      $region33: #{attention_output_head.1} parent=31 // pred_check
        %p281 = pneg %p52
      $region34: #{attention_output_head.1} parent=31 // pred_check_branch
        %283 = sbr.rel (%p281) target = $region36
      $region35: #{attention_output_head.1} parent=31 // pred_region
        %s284 = smul.u32 %s23, 2
        %s285 = sadd.s32 %s284, %s24
        %s286 = smul.u32 16, %s285
        %p287 = scmp.lt.s32.totalorder %s286, 63
        %s288 = scalar_select %p287, %s286, 63
        %s289 = smul.addr %s288, 8
        %s290 = scalar_lea.vmem %s0, %s289
        %s291 = smul.u32 %s23, 2
        %s292 = sadd.s32 %s291, %s24
        %s293 = smul.u32 16, %s292
      $region36: #{attention_output_head.1} parent=31 // pred_fallthru
        _
    $region32: #{attention_output_head.1} parent=5 // pred_fallthru
      _
    %p294 = scmp.le.s32.totalorder 1, %s16
    %p295 = scmp.lt.s32.totalorder %s16, 5
    %p296 = pnand %p294, %p295
    %p297 = pneg %p296
    // Predicated region
    $region37: #{attention_output_head.1} parent=5 // pred_check
      _
    $region38: #{attention_output_head.1} parent=5 // pred_check_branch
      %299 = sbr.rel (%p296) target = $region40
    $region39: #{attention_output_head.1} parent=5 // pred_region
      %s300 = ssub.s32 %s16, 1
      %s301 = smul.u32 %s25, 2
      %s302 = sadd.s32 %s301, %s26
      %s303 = smul.u32 16, %s302
      %p304 = scmp.lt.s32.totalorder %s303, 63
      %s305 = scalar_select %p304, %s303, 63
      %s306 = smul.addr %s305, 8
      %s307 = scalar_lea.vmem %s0, %s306
      %p308 = pneg %p58
      %p309 = pneg %p55
      %p310 = pneg %p79
      %p311 = pneg %p76
      %p312 = pneg %p100
      %p313 = pneg %p97
      %p314 = pneg %p121
      %p315 = pneg %p118
      %p316 = pneg %p142
      %p317 = pneg %p139
      %p318 = pneg %p172
      %p319 = pneg %p169
      %s320 = smul.u32 %s25, 2
      %s321 = sadd.s32 %s320, %s26
      %p322 = scmp.lt.s32.totalorder %s321, 3
      %s323 = scalar_select %p322, %s321, 3
      %s324 = scalar_lea.vmem %s5, %s323
      %p325 = pneg %p198
      %p326 = pneg %p195
      %p327 = scmp.lt.s32.totalorder %s25, 1
      %s328 = scalar_select %p327, %s25, 1
      %s329 = scalar_lea.vmem %s6, %s328
      %p330 = pneg %p224
      %p331 = pneg %p221
      %p332 = scmp.lt.s32.totalorder %s25, 1
      %s333 = scalar_select %p332, %s25, 1
      %s334 = scalar_lea.vmem %s7, %s333
      %p335 = pneg %p250
      %p336 = pneg %p247
      %p337 = scmp.lt.s32.totalorder %s25, 1
      %s338 = scalar_select %p337, %s25, 1
      %s339 = scalar_lea.vmem %s8, %s338
      %s340 = smul.u32 %s25, 2
      %s341 = sadd.s32 %s340, %s26
      %s342 = smul.u32 16, %s341
      %p343 = scmp.lt.s32.totalorder %s342, 63
      %s344 = scalar_select %p343, %s342, 63
      %s345 = smul.addr %s344, 8
      %s346 = scalar_lea.vmem %s0, %s345
      %s347 = smul.u32 %s25, 2
      %s348 = sadd.s32 %s347, %s26
      %s349 = smul.u32 16, %s348
      %s350 = smul.u32 %s25, 2
      %s351 = sadd.s32 %s350, %s26
      %p352 = scmp.lt.s32.totalorder %s351, 3
      %s353 = scalar_select %p352, %s351, 3
      %s354 = scalar_lea.vmem %s5, %s353
      %s355 = smul.u32 %s25, 2
      %s356 = sadd.s32 %s355, %s26
      %p357 = scmp.lt.s32.totalorder %s25, 1
      %s358 = scalar_select %p357, %s25, 1
      %s359 = scalar_lea.vmem %s6, %s358
      %p360 = scmp.lt.s32.totalorder %s25, 1
      %s361 = scalar_select %p360, %s25, 1
      %s362 = scalar_lea.vmem %s7, %s361
      %p363 = scmp.lt.s32.totalorder %s25, 1
      %s364 = scalar_select %p363, %s25, 1
      %s365 = scalar_lea.vmem %s8, %s364
      %p367 = scmp.eq.s32.totalorder %s26, 0
      // Predicated region
      $region41: #{attention_output_head.1} parent=39 // pred_check
        %p368 = pneg %p367
      $region42: #{attention_output_head.1} parent=39 // pred_check_branch
        %370 = sbr.rel (%p368) target = $region44
      $region43: #{attention_output_head.1} parent=39 // pred_region
        %vm371 = vcmask 0
        %372 = vst.msk [vmem:[#allocation2] sm:$0x1] %vm371, -inf
        %373 = vst.msk [vmem:[#allocation3] sm:$0x1] %vm371, 0.0
        %vm374 = vcmask 253952
        %375 = vst.msk [vmem:[#allocation4] sm:$0x1] %vm374, 0.0
      $region44: #{attention_output_head.1} parent=39 // pred_fallthru
        _
      %v376 = vld [vmem:[%s346] sm:$0xff]
      %v377 = vld [vmem:[%s346 + $0x8] sm:$0xff]
      %v378 = vld [vmem:[%s346 + $0x10] sm:$0xff]
      %v379 = vld [vmem:[%s346 + $0x18] sm:$0xff]
      %v380 = vld [vmem:[%s346 + $0x20] sm:$0xff]
      %v381 = vld [vmem:[%s346 + $0x28] sm:$0xff]
      %v382 = vld [vmem:[%s346 + $0x30] sm:$0xff]
      %v383 = vld [vmem:[%s346 + $0x38] sm:$0xff]
      %v384 = vld [vmem:[%s346 + $0x40] sm:$0xff]
      %v385 = vld [vmem:[%s346 + $0x48] sm:$0xff]
      %v386 = vld [vmem:[%s346 + $0x50] sm:$0xff]
      %v387 = vld [vmem:[%s346 + $0x58] sm:$0xff]
      %v388 = vld [vmem:[%s346 + $0x60] sm:$0xff]
      %v389 = vld [vmem:[%s346 + $0x68] sm:$0xff]
      %v390 = vld [vmem:[%s346 + $0x70] sm:$0xff]
      %v391 = vld [vmem:[%s346 + $0x78] sm:$0xff]
      %v392 = vpack.c.bf16 %v377, %v376
      %v393 = vpack.c.bf16 %v379, %v378
      %v394 = vpack.c.bf16 %v381, %v380
      %v395 = vpack.c.bf16 %v383, %v382
      %v396 = vpack.c.bf16 %v385, %v384
      %v397 = vpack.c.bf16 %v387, %v386
      %v398 = vpack.c.bf16 %v389, %v388
      %v399 = vpack.c.bf16 %v391, %v390
      %v400 = vld [vmem:[%s1] sm:$0xf]
      %v401 = vld [vmem:[%s1 + $0x4] sm:$0xf]
      %v402 = vld [vmem:[%s1 + $0x8] sm:$0xf]
      %v403 = vld [vmem:[%s1 + $0xc] sm:$0xf]
      %v404 = vld [vmem:[%s2] sm:$0x1]
      %v406 = vlaneseq
      %v407 = vshrl.u32 %v406, 7
      %v408 = vsub.s32 0, %v407
      %v409 = vrot.slane %v404, %v408
      %v415 = vunpack.c.l.b16 %v400
      %v416 = vunpack.c.l.b16 %v401
      %v417 = vunpack.c.l.b16 %v402
      %v418 = vunpack.c.l.b16 %v403
      %v419 = vpack.c.b16 %v416, %v415
      %v420 = vpack.c.b16 %v418, %v417
      %vm423 = vcmask 261120
      %v425 = vsel %vm423, %v392, 0
      %v428 = vsel %vm423, %v393, 0
      %v431 = vsel %vm423, %v394, 0
      %v434 = vsel %vm423, %v395, 0
      %v437 = vsel %vm423, %v396, 0
      %v440 = vsel %vm423, %v397, 0
      %v443 = vsel %vm423, %v398, 0
      %v446 = vsel %vm423, %v399, 0
      %448 = vmatprep.subr.bf16.mxu0 0
      %449 = vmatpush1.bf16.msra.mxu0 0
      %450 = vmatprep.subr.bf16.mxu0 0
      %451 = vmatpush1.bf16.msra.mxu0 0
      %452 = vmatprep.subr.bf16.mxu0 0
      %453 = vmatpush1.bf16.msra.mxu0 0
      %454 = vmatprep.subr.bf16.mxu0 0
      %455 = vmatpush1.bf16.msra.mxu0 0
      %456 = vmatprep.subr.bf16.mxu0 0
      %457 = vmatpush1.bf16.msra.mxu0 0
      %458 = vmatprep.subr.bf16.mxu0 0
      %459 = vmatpush1.bf16.msra.mxu0 0
      %460 = vmatprep.subr.bf16.mxu0 0
      %461 = vmatpush1.bf16.msra.mxu0 %v420
      %462 = vmatprep.subr.bf16.mxu0 0
      %463 = vmatpush1.bf16.msra.mxu0 %v419
      %464 = vmatprep.subr.bf16.mxu0 0
      %465 = vmatpush2.bf16.msra.mxu0 0
      %466 = vmatprep.subr.bf16.mxu0 0
      %467 = vmatpush2.bf16.msra.mxu0 0
      %468 = vmatprep.subr.bf16.mxu0 0
      %469 = vmatpush2.bf16.msra.mxu0 0
      %470 = vmatprep.subr.bf16.mxu0 0
      %471 = vmatpush2.bf16.msra.mxu0 0
      %472 = vmatprep.subr.bf16.mxu0 0
      %473 = vmatpush2.bf16.msra.mxu0 0
      %474 = vmatprep.subr.bf16.mxu0 0
      %475 = vmatpush2.bf16.msra.mxu0 0
      %476 = vmatprep.subr.bf16.mxu0 0
      %477 = vmatpush2.bf16.msra.mxu0 0
      %478 = vmatprep.subr.bf16.mxu0 0
      %479 = vmatpush2.bf16.msra.mxu0 0
      %480 = vmatprep.mubr.bf16.mxu0 0
      %481 = vmatmul.mubr.bf16.gmra.mxu0 %v425
      %v482 = vpop.f32.mrf.mxu0
      %v483 = vadd.f32 %v409, %v482
      %v484 = vpop.f32.mrf.mxu0
      %v485 = vpop.f32.mrf.mxu0
      %v486 = vadd.f32 %v409, %v485
      %v487 = vpop.f32.mrf.mxu0
      %488 = vmatprep.mubr.bf16.mxu0 0
      %489 = vmatmul.mubr.bf16.gmra.mxu0 %v428
      %v490 = vpop.f32.mrf.mxu0
      %v491 = vadd.f32 %v409, %v490
      %v492 = vpop.f32.mrf.mxu0
      %v493 = vpop.f32.mrf.mxu0
      %v494 = vadd.f32 %v409, %v493
      %v495 = vpop.f32.mrf.mxu0
      %496 = vmatprep.mubr.bf16.mxu0 0
      %497 = vmatmul.mubr.bf16.gmra.mxu0 %v431
      %v498 = vpop.f32.mrf.mxu0
      %v499 = vadd.f32 %v409, %v498
      %v500 = vpop.f32.mrf.mxu0
      %v501 = vpop.f32.mrf.mxu0
      %v502 = vadd.f32 %v409, %v501
      %v503 = vpop.f32.mrf.mxu0
      %504 = vmatprep.mubr.bf16.mxu0 0
      %505 = vmatmul.mubr.bf16.gmra.mxu0 %v434
      %v506 = vpop.f32.mrf.mxu0
      %v507 = vadd.f32 %v409, %v506
      %v508 = vpop.f32.mrf.mxu0
      %v509 = vpop.f32.mrf.mxu0
      %v510 = vadd.f32 %v409, %v509
      %v511 = vpop.f32.mrf.mxu0
      %512 = vmatprep.mubr.bf16.mxu0 0
      %513 = vmatmul.mubr.bf16.gmra.mxu0 %v437
      %v514 = vpop.f32.mrf.mxu0
      %v515 = vadd.f32 %v409, %v514
      %v516 = vpop.f32.mrf.mxu0
      %v517 = vpop.f32.mrf.mxu0
      %v518 = vadd.f32 %v409, %v517
      %v519 = vpop.f32.mrf.mxu0
      %520 = vmatprep.mubr.bf16.mxu0 0
      %521 = vmatmul.mubr.bf16.gmra.mxu0 %v440
      %v522 = vpop.f32.mrf.mxu0
      %v523 = vadd.f32 %v409, %v522
      %v524 = vpop.f32.mrf.mxu0
      %v525 = vpop.f32.mrf.mxu0
      %v526 = vadd.f32 %v409, %v525
      %v527 = vpop.f32.mrf.mxu0
      %528 = vmatprep.mubr.bf16.mxu0 0
      %529 = vmatmul.mubr.bf16.gmra.mxu0 %v443
      %v530 = vpop.f32.mrf.mxu0
      %v531 = vadd.f32 %v409, %v530
      %v532 = vpop.f32.mrf.mxu0
      %v533 = vpop.f32.mrf.mxu0
      %v534 = vadd.f32 %v409, %v533
      %v535 = vpop.f32.mrf.mxu0
      %536 = vmatprep.mubr.bf16.mxu0 0
      %537 = vmatmul.mubr.bf16.gmra.mxu0 %v446
      %v538 = vpop.f32.mrf.mxu0
      %v539 = vadd.f32 %v409, %v538
      %v540 = vpop.f32.mrf.mxu0
      %v541 = vpop.f32.mrf.mxu0
      %v542 = vadd.f32 %v409, %v541
      %v543 = vpop.f32.mrf.mxu0
      %544 = vdwg.mxu0
      %v545 = vtanh.pop %v483
      %v546 = vtanh.pop %v486
      %v547 = vtanh.pop %v491
      %v548 = vtanh.pop %v494
      %v549 = vtanh.pop %v499
      %v550 = vtanh.pop %v502
      %v551 = vtanh.pop %v507
      %v552 = vtanh.pop %v510
      %v553 = vtanh.pop %v515
      %v554 = vtanh.pop %v518
      %v555 = vtanh.pop %v523
      %v556 = vtanh.pop %v526
      %v557 = vtanh.pop %v531
      %v558 = vtanh.pop %v534
      %v559 = vtanh.pop %v539
      %v560 = vtanh.pop %v542
      %v561 = vld [vmem:[%s3] sm:$0x1]
      %v562 = vpack.c.bf16 %v546, %v545
      %v563 = vpack.c.bf16 %v548, %v547
      %v564 = vpack.c.bf16 %v550, %v549
      %v565 = vpack.c.bf16 %v552, %v551
      %v566 = vpack.c.bf16 %v554, %v553
      %v567 = vpack.c.bf16 %v556, %v555
      %v568 = vpack.c.bf16 %v558, %v557
      %v569 = vpack.c.bf16 %v560, %v559
      %s570 = sld [smem:[#allocation5]]
      %v571 = vstv %s570
      %vm572 = vcmask 130048
      %v574 = vsel %vm572, %v561, 0
      %v577 = vsel %vm572, %v562, 0
      %v580 = vsel %vm572, %v563, 0
      %v583 = vsel %vm572, %v564, 0
      %v586 = vsel %vm572, %v565, 0
      %v589 = vsel %vm572, %v566, 0
      %v592 = vsel %vm572, %v567, 0
      %v595 = vsel %vm572, %v568, 0
      %v598 = vsel %vm572, %v569, 0
      %600 = vmatprep.subr.bf16.mxu0 0
      %601 = vmatpush1.bf16.xpose.msra.mxu0 %v598
      %602 = vmatprep.subr.bf16.mxu0 0
      %603 = vmatpush1.bf16.xpose.msra.mxu0 %v595
      %604 = vmatprep.subr.bf16.mxu0 0
      %605 = vmatpush1.bf16.xpose.msra.mxu0 %v592
      %606 = vmatprep.subr.bf16.mxu0 0
      %607 = vmatpush1.bf16.xpose.msra.mxu0 %v589
      %608 = vmatprep.subr.bf16.mxu0 0
      %609 = vmatpush1.bf16.xpose.msra.mxu0 %v586
      %610 = vmatprep.subr.bf16.mxu0 0
      %611 = vmatpush1.bf16.xpose.msra.mxu0 %v583
      %612 = vmatprep.subr.bf16.mxu0 0
      %613 = vmatpush1.bf16.xpose.msra.mxu0 %v580
      %614 = vmatprep.subr.bf16.mxu0 0
      %615 = vmatpush1.bf16.xpose.msra.mxu0 %v577
      %616 = vmatprep.subr.bf16.mxu0 0
      %617 = vmatpush2.bf16.xpose.msra.mxu0 0
      %618 = vmatprep.subr.bf16.mxu0 0
      %619 = vmatpush2.bf16.xpose.msra.mxu0 0
      %620 = vmatprep.subr.bf16.mxu0 0
      %621 = vmatpush2.bf16.xpose.msra.mxu0 0
      %622 = vmatprep.subr.bf16.mxu0 0
      %623 = vmatpush2.bf16.xpose.msra.mxu0 0
      %624 = vmatprep.subr.bf16.mxu0 0
      %625 = vmatpush2.bf16.xpose.msra.mxu0 0
      %626 = vmatprep.subr.bf16.mxu0 0
      %627 = vmatpush2.bf16.xpose.msra.mxu0 0
      %628 = vmatprep.subr.bf16.mxu0 0
      %629 = vmatpush2.bf16.xpose.msra.mxu0 0
      %630 = vmatprep.subr.bf16.mxu0 0
      %631 = vmatpush2.bf16.xpose.msra.mxu0 0
      %632 = vmatprep.mubr.bf16.mxu0 0
      %633 = vmatmul.mubr.bf16.gmra.mxu0 %v574
      %v634 = vpop.f32.mrf.mxu0
      %v635 = vadd.f32 %v571, %v634
      %v636 = vpop.f32.mrf.mxu0
      %v637 = vpop.f32.mrf.mxu0
      %v638 = vpop.f32.mrf.mxu0
      %639 = vdwg.mxu0
      %640 = vst [vmem:[%s354] sm:$0x1] %v635
      %v641 = vld [vmem:[#allocation2] sm:$0x1]
      %vm642 = vcmask 1040384
      %v643 = vsel %vm642, %v635, -inf
      %644 = vmax.xlane.f32.xlu0 %v643
      %v645 = vpop.xlane.xlu0 %644
      %v646 = vmax.f32 %v641, %v645
      %v647 = vsub.f32 %v641, %v646
      %v648 = vmul.f32 %v647, 1.442695
      %v649 = vpow.pop %v648
      %651 = vset.pattern.permute.xlu0 0
      %652 = vperm.xlu0 %651, %v646
      %v653 = vpop.permute.xlu0 %652
      %v655 = vlaneseq
      %v656 = vshrl.u32 %v655, 7
      %v657 = vsub.s32 0, %v656
      %v658 = vrot.slane %v653, %v657
      %v659 = vsub.f32 %v635, %v658
      %v660 = vmul.f32 %v659, 1.442695
      %v661 = vpow.pop %v660
      %v662 = vld [vmem:[#allocation3] sm:$0x1]
      %v663 = vmul.f32 %v649, %v662
      %v664 = vsel %vm642, %v661, 0.0
      %665 = vadd.xlane.f32.xlu0 %v664
      %v666 = vpop.xlane.xlu0 %665
      %v667 = vadd.f32 %v663, %v666
      %vm668 = vcmask 0
      %669 = vst.msk [vmem:[#allocation3] sm:$0x1] %vm668, %v667
      %v670 = vld [vmem:[#allocation4] sm:$0x1]
      %672 = vset.pattern.permute.xlu0 0
      %673 = vperm.xlu0 %672, %v649
      %v674 = vpop.permute.xlu0 %673
      %v676 = vlaneseq
      %v677 = vshrl.u32 %v676, 7
      %v678 = vsub.s32 0, %v677
      %v679 = vrot.slane %v674, %v678
      %v680 = vmul.f32 %v679, %v670
      %v681 = vpack.c.bf16 %v661, %v661
      %682 = vmatprep.subr.bf16.mxu0 0
      %683 = vmatpush1.bf16.msra.mxu0 %v399
      %684 = vmatprep.subr.bf16.mxu0 0
      %685 = vmatpush1.bf16.msra.mxu0 %v398
      %686 = vmatprep.subr.bf16.mxu0 0
      %687 = vmatpush1.bf16.msra.mxu0 %v397
      %688 = vmatprep.subr.bf16.mxu0 0
      %689 = vmatpush1.bf16.msra.mxu0 %v396
      %690 = vmatprep.subr.bf16.mxu0 0
      %691 = vmatpush1.bf16.msra.mxu0 %v395
      %692 = vmatprep.subr.bf16.mxu0 0
      %693 = vmatpush1.bf16.msra.mxu0 %v394
      %694 = vmatprep.subr.bf16.mxu0 0
      %695 = vmatpush1.bf16.msra.mxu0 %v393
      %696 = vmatprep.subr.bf16.mxu0 0
      %697 = vmatpush1.bf16.msra.mxu0 %v392
      %698 = vmatprep.subr.bf16.mxu0 0
      %699 = vmatpush2.bf16.msra.mxu0 0
      %700 = vmatprep.subr.bf16.mxu0 0
      %701 = vmatpush2.bf16.msra.mxu0 0
      %702 = vmatprep.subr.bf16.mxu0 0
      %703 = vmatpush2.bf16.msra.mxu0 0
      %704 = vmatprep.subr.bf16.mxu0 0
      %705 = vmatpush2.bf16.msra.mxu0 0
      %706 = vmatprep.subr.bf16.mxu0 0
      %707 = vmatpush2.bf16.msra.mxu0 0
      %708 = vmatprep.subr.bf16.mxu0 0
      %709 = vmatpush2.bf16.msra.mxu0 0
      %710 = vmatprep.subr.bf16.mxu0 0
      %711 = vmatpush2.bf16.msra.mxu0 0
      %712 = vmatprep.subr.bf16.mxu0 0
      %713 = vmatpush2.bf16.msra.mxu0 0
      %714 = vmatprep.mubr.bf16.mxu0 0
      %715 = vmatmul.mubr.bf16.gmra.mxu0 %v681
      %v716 = vpop.f32.mrf.mxu0
      %v717 = vadd.f32 0.0, %v716
      %v718 = vpop.f32.mrf.mxu0
      %v719 = vpop.f32.mrf.mxu0
      %v720 = vpop.f32.mrf.mxu0
      %721 = vdwg.mxu0
      %v722 = vadd.f32 %v680, %v717
      %vm723 = vcmask 253952
      %724 = vst.msk [vmem:[#allocation4] sm:$0x1] %vm723, %v722
      %725 = vst.msk [vmem:[#allocation2] sm:$0x1] %vm668, %v646
      %p726 = scmp.eq.s32.totalorder %s26, 1
      // Predicated region
      $region45: #{attention_output_head.1} parent=39 // pred_check
        %p727 = pneg %p726
      $region46: #{attention_output_head.1} parent=39 // pred_check_branch
        %729 = sbr.rel (%p727) target = $region48
      $region47: #{attention_output_head.1} parent=39 // pred_region
        %v730 = vld [vmem:[#allocation2] sm:$0x1]
        %731 = vst.msk [vmem:[%s359] sm:$0x1] %vm668, %v730
        %v732 = vld [vmem:[#allocation3] sm:$0x1]
        %733 = vst.msk [vmem:[%s362] sm:$0x1] %vm668, %v732
        %v734 = vld [vmem:[#allocation4] sm:$0x1]
        %735 = vst.msk [vmem:[%s365] sm:$0x1] %vm723, %v734
      $region48: #{attention_output_head.1} parent=39 // pred_fallthru
        _
      %s736 = smul.u32 %s25, 2
      %s737 = sadd.s32 %s736, %s26
      %p738 = scmp.lt.s32.totalorder %s737, 3
      %s739 = scalar_select %p738, %s737, 3
      %s740 = scalar_lea.vmem %s5, %s739
      %p741 = scmp.lt.s32.totalorder %s25, 1
      %s742 = scalar_select %p741, %s25, 1
      %s743 = scalar_lea.vmem %s6, %s742
      %p744 = scmp.lt.s32.totalorder %s25, 1
      %s745 = scalar_select %p744, %s25, 1
      %s746 = scalar_lea.vmem %s7, %s745
      %p747 = scmp.lt.s32.totalorder %s25, 1
      %s748 = scalar_select %p747, %s25, 1
      %s749 = scalar_lea.vmem %s8, %s748
      // Predicated region
      $region49: #{attention_output_head.1} parent=39 // pred_check
        %p750 = pneg %p169
      $region50: #{attention_output_head.1} parent=39 // pred_check_branch
        %752 = sbr.rel (%p750) target = $region52
      $region51: #{attention_output_head.1} parent=39 // pred_region
        %s753 = smul.u32 %s25, 2
        %s754 = sadd.s32 %s753, %s26
      $region52: #{attention_output_head.1} parent=39 // pred_fallthru
        _
      // Predicated region
      $region53: #{attention_output_head.1} parent=39 // pred_check
        %p755 = pneg %p195
      $region54: #{attention_output_head.1} parent=39 // pred_check_branch
        %757 = sbr.rel (%p755) target = $region56
      $region55: #{attention_output_head.1} parent=39 // pred_region
        _
      $region56: #{attention_output_head.1} parent=39 // pred_fallthru
        _
      // Predicated region
      $region57: #{attention_output_head.1} parent=39 // pred_check
        %p758 = pneg %p221
      $region58: #{attention_output_head.1} parent=39 // pred_check_branch
        %760 = sbr.rel (%p758) target = $region60
      $region59: #{attention_output_head.1} parent=39 // pred_region
        _
      $region60: #{attention_output_head.1} parent=39 // pred_fallthru
        _
      // Predicated region
      $region61: #{attention_output_head.1} parent=39 // pred_check
        %p761 = pneg %p247
      $region62: #{attention_output_head.1} parent=39 // pred_check_branch
        %763 = sbr.rel (%p761) target = $region64
      $region63: #{attention_output_head.1} parent=39 // pred_region
        _
      $region64: #{attention_output_head.1} parent=39 // pred_fallthru
        _
    $region40: #{attention_output_head.1} parent=5 // pred_fallthru
      _
    %p764 = scmp.le.s32.totalorder 2, %s16
    // Predicated region
    $region65: #{attention_output_head.1} parent=5 // pred_check
      %p765 = pneg %p764
    $region66: #{attention_output_head.1} parent=5 // pred_check_branch
      %767 = sbr.rel (%p765) target = $region68
    $region67: #{attention_output_head.1} parent=5 // pred_region
      %s768 = ssub.s32 %s16, 2
      // Predicated region
      $region69: #{attention_output_head.1} parent=67 // pred_check
        %p769 = pneg %p175
      $region70: #{attention_output_head.1} parent=67 // pred_check_branch
        %771 = sbr.rel (%p769) target = $region72
      $region71: #{attention_output_head.1} parent=67 // pred_region
        %s772 = smul.u32 %s27, 2
        %s773 = sadd.s32 %s772, %s28
        %p774 = scmp.lt.s32.totalorder %s773, 3
        %s775 = scalar_select %p774, %s773, 3
        %s776 = scalar_lea.vmem %s5, %s775
      $region72: #{attention_output_head.1} parent=67 // pred_fallthru
        _
      // Predicated region
      $region73: #{attention_output_head.1} parent=67 // pred_check
        %p777 = pneg %p201
      $region74: #{attention_output_head.1} parent=67 // pred_check_branch
        %779 = sbr.rel (%p777) target = $region76
      $region75: #{attention_output_head.1} parent=67 // pred_region
        %p780 = scmp.lt.s32.totalorder %s27, 1
        %s781 = scalar_select %p780, %s27, 1
        %s782 = scalar_lea.vmem %s6, %s781
      $region76: #{attention_output_head.1} parent=67 // pred_fallthru
        _
      // Predicated region
      $region77: #{attention_output_head.1} parent=67 // pred_check
        %p783 = pneg %p227
      $region78: #{attention_output_head.1} parent=67 // pred_check_branch
        %785 = sbr.rel (%p783) target = $region80
      $region79: #{attention_output_head.1} parent=67 // pred_region
        %p786 = scmp.lt.s32.totalorder %s27, 1
        %s787 = scalar_select %p786, %s27, 1
        %s788 = scalar_lea.vmem %s7, %s787
      $region80: #{attention_output_head.1} parent=67 // pred_fallthru
        _
      // Predicated region
      $region81: #{attention_output_head.1} parent=67 // pred_check
        %p789 = pneg %p253
      $region82: #{attention_output_head.1} parent=67 // pred_check_branch
        %791 = sbr.rel (%p789) target = $region84
      $region83: #{attention_output_head.1} parent=67 // pred_region
        %p792 = scmp.lt.s32.totalorder %s27, 1
        %s793 = scalar_select %p792, %s27, 1
        %s794 = scalar_lea.vmem %s8, %s793
      $region84: #{attention_output_head.1} parent=67 // pred_fallthru
        _
    $region68: #{attention_output_head.1} parent=5 // pred_fallthru
      _
  $region6: #{attention_output_head.1} parent=0 // loop_footer
    %s20 = sadd.s32 1, %s16
  $region7: #{attention_output_head.1} parent=0 // loop_footer_branch
    %15 = sbr.rel target = $region3
  $region8: #{attention_output_head.1} parent=0 // loop_exit
    _

</llo_original>
